<compile_context>
chip_gen: v7x
topology: tpu7x:2x2x1
jax: 0.10.0
libtpu: 0.0.40
codegen_flags: <defaults>
</compile_context>

<pallas_src>
import functools

import jax
import jax.numpy as jnp
from jax import lax
from jax.experimental import pallas as pl
from jax.experimental.pallas import tpu as pltpu


def _cbn_kernel(x_ref, o_ref, *, hw: int, native_out: bool):
    """x_ref/o_ref: (tile_r, 2*hw) rows of interleaved [re, im, re, im, ...].

    Ragged last grid block: out-of-range rows hold garbage and go through
    rsqrt (possible NaN/inf there).  This is safe ONLY because every reduction
    is strictly per-row and Pallas masks stores of out-of-range rows — do not
    add cross-row reductions.
    """
    x_raw = x_ref[...]
    v = x_raw.astype(jnp.float32)
    n2 = v.shape[-1]                      # 2 * hw
    v2 = v * v

    # Lane bookkeeping on a single (1, n2) row (broadcast later): keeps the
    # int32 iota/xor/parity work at 1/tile_r of full-tile cost while staying
    # agnostic to pltpu.roll's rotation direction (the companion-iota roll is
    # a one-row XLU op, essentially free).
    lane = lax.broadcasted_iota(jnp.int32, (1, n2), dimension=1)
    partner = jnp.bitwise_xor(lane, 1)        # pair partner = lane ^ 1
    even = jnp.bitwise_and(lane, 1) == 0      # real-part lanes
    i1 = pltpu.roll(lane, 1, axis=1)          # lane index carried by r1

    # Pairwise |z|^2 broadcast to both lanes of each (re, im) pair via the two
    # unit lane rotations (XLU); exactly one of them holds v2[partner].
    r1 = pltpu.roll(v2, 1, axis=1)
    r2 = pltpu.roll(v2, n2 - 1, axis=1)
    v2_partner = jnp.where(i1 == partner, r1, r2)
    sq = v2 + v2_partner                      # |z|^2 at every lane; v2 dead here

    zero = sq == 0.0
    inv_mag = lax.rsqrt(jnp.where(zero, 1.0, sq))   # safe 1/|z| (EUP)
    mag = sq * inv_mag                              # |z| (exactly 0 where z == 0)

    # One-pass fused statistics over the hw complex samples of each row
    # (each pair contributes to both of its lanes, hence the 0.5 factors).
    s1 = jnp.sum(mag, axis=1, keepdims=True)        # = 2 * sum(|z|)
    s2 = 0.5 * jnp.sum(sq, axis=1, keepdims=True)   # = sum(|z|^2)
    mean = s1 * (0.5 / hw)
    # torch.std is unbiased (N-1); for hw == 1 torch yields NaN -> propagate NaN.
    unbiased = (1.0 / (hw - 1)) if hw > 1 else float("nan")
    var = jnp.maximum(s2 - hw * (mean * mean), 0.0) * unbiased
    inv_std = lax.rsqrt(var)   # inf for constant-magnitude rows (matches /0 std)

    c = 1.0 - mean * inv_std                        # nmag value where |z| == 0
    # ((|z| - mean) * inv_std + 1) / |z|  ==  inv_std + c / |z|
    scale = inv_std + c * inv_mag
    # |z| == 0: reference gives (nmag*cos(0), nmag*sin(0)) = (c, 0); the odd
    # (imag) lane already yields 0 via v * scale since v == 0 there.
    zero_even = jnp.logical_and(zero, even)

    if native_out and o_ref.dtype != jnp.float32:
        # bf16 VPU path (v6e/v7x): final elementwise multiply in the I/O dtype.
        o_ref[...] = jnp.where(zero_even, c.astype(o_ref.dtype),
                               x_raw * scale.astype(o_ref.dtype))
    else:
        out = jnp.where(zero_even, c, v * scale)
        o_ref[...] = out.astype(o_ref.dtype)


def _device_kind() -> str:
    try:
        return jax.devices()[0].device_kind.lower()
    except Exception:
        return ""


def _is_pre_v6() -> bool:
    kind = _device_kind()
    return any(t in kind for t in ("v2", "v3", "v4", "v5"))


def _physical_vmem_bytes() -> int:
    """Best-effort physical VMEM per TensorCore."""
    try:
        cap = getattr(pltpu.get_tpu_info(), "vmem_capacity_bytes", None)
        if cap:
            return int(cap)
    except Exception:
        pass
    kind = _device_kind()
    if any(t in kind for t in ("v4", "v5", "v6")):
        return 128 * 1024 * 1024
    if any(t in kind for t in ("v2", "v3")):
        return 16 * 1024 * 1024
    return 64 * 1024 * 1024           # conservative default (v7x per-TC VMEM)


def _round_up(n: int, m: int) -> int:
    return ((n + m - 1) // m) * m


def _pick_tile_rows(bc: int, hw2: int, in_itemsize: int, vmem_bytes: int) -> int:
    # Sublane granularity follows the native packed tiling of the I/O dtype:
    # 4-byte -> (8, 128), 2-byte (bf16/fp16) -> (16, 128), 1-byte -> (32, 128).
    sub = 8 if in_itemsize >= 4 else (16 if in_itemsize == 2 else 32)
    # Per-row footprint: (in + out) x 2 pipeline buffers in the I/O dtype plus
    # ~6 live full-tile f32 temporaries (everything is upcast to f32 for the
    # statistics path regardless of input dtype).
    bytes_per_row = hw2 * (4 * in_itemsize + 6 * 4)
    soft_budget = int(vmem_bytes * 0.5)   # target block size (headroom for pipeline)
    hard_budget = int(vmem_bytes * 0.7)   # never emit a block beyond this
    if sub * bytes_per_row > hard_budget:
        # TODO(synk): for very large H*W, add a second "arbitrary" grid axis
        # over HW with scratch accumulators (two-pass mean/var, then a
        # normalize pass) instead of failing here.
        raise ValueError(
            "complex_batch_normalize: H*W too large for the single-pass "
            f"kernel ({sub} rows x {bytes_per_row} B/row exceeds the VMEM "
            f"budget of {hard_budget} B)")
    tile = max((soft_budget // bytes_per_row) // sub * sub, sub)
    bc_rounded = _round_up(bc, sub)
    tile = min(tile, bc_rounded)
    # Keep >= 2 grid blocks when possible so both v7x TensorCores get work
    # (dimension_semantics=("parallel",) shards grid blocks across cores);
    # the extra grid step (~0.35 us) is negligible on single-TC v5e/v6e.
    if bc_rounded > sub:
        tile = min(tile, _round_up(pl.cdiv(bc, 2), sub))
    return tile


def complex_batch_normalize(x):
    """x: (B, C, H, W, 2) float array -> same shape/dtype."""
    B, C, H, W, two = x.shape
    assert two == 2, "last dim must be [real, imag]"
    BC, HW = B * C, H * W
    HW2 = 2 * HW

    # Free reshape: (B, C, H, W, 2) is contiguous -> (BC, 2*HW); each row is
    # the interleaved complex plane of one (batch, channel).
    xr = x.reshape(BC, HW2)

    phys_vmem = _physical_vmem_bytes()
    itemsize = x.dtype.itemsize
    tile_r = _pick_tile_rows(BC, HW2, itemsize, phys_vmem)
    grid = (pl.cdiv(BC, tile_r),)

    spec = pl.BlockSpec((tile_r, HW2), lambda i: (i, 0))
    native_out = (itemsize == 2) and not _is_pre_v6()

    cost = pl.CostEstimate(
        flops=10 * BC * HW2,
        transcendentals=BC * HW2 + BC,        # per-lane rsqrt + per-row rsqrt
        bytes_accessed=2 * BC * HW2 * itemsize,
    )

    out = pl.pallas_call(
        functools.partial(_cbn_kernel, hw=HW, native_out=native_out),
        out_shape=jax.ShapeDtypeStruct((BC, HW2), x.dtype),
        grid_spec=pltpu.PrefetchScalarGridSpec(
            num_scalar_prefetch=0,
            grid=grid,
            in_specs=[spec],
            out_specs=spec,
        ),
        compiler_params=pltpu.CompilerParams(
            dimension_semantics=("parallel",),
            vmem_limit_bytes=int(phys_vmem * 0.75),
        ),
        cost_estimate=cost,
    )(xr)

    return out.reshape(B, C, H, W, 2)


def _reference(x):
    # pure-JAX reference mirroring the PyTorch code
    re, im = x[..., 0], x[..., 1]
    mag = jnp.sqrt(re * re + im * im)
    phase = jnp.arctan2(im, re)
    B, C, H, W = mag.shape
    m = mag.reshape(B, C, H * W)
    mean = jnp.mean(m, axis=2, keepdims=True)
    std = jnp.sqrt(jnp.sum((m - mean) ** 2, axis=2, keepdims=True) / (H * W - 1))
    nmag = ((m - mean) / std + 1.0).reshape(B, C, H, W)
    return jnp.stack([nmag * jnp.cos(phase), nmag * jnp.sin(phase)], axis=-1)


if __name__ == "__main__":
    key = jax.random.PRNGKey(0)
    B, C, H, W = 2, 4, 16, 16
    x = jax.random.normal(key, (B, C, H, W, 2), dtype=jnp.float32)

    out = jax.block_until_ready(complex_batch_normalize(x))

    ref = _reference(x)
    assert out.shape == (B, C, H, W, 2)
    assert jnp.allclose(out, ref, atol=1e-4, rtol=1e-4), "mismatch vs reference"

    print("KERNEL_OK")
</pallas_src>

<mosaic_0001>
module attributes {stable_mosaic.version = 11 : i64} {
  func.func @_cbn_kernel(%arg0: i32, %arg1: memref<8x512xf32, #tpu.memory_space<vmem>>, %arg2: memref<8x512xf32, #tpu.memory_space<vmem>>) attributes {dimension_semantics = [#tpu.dimension_semantics<parallel>], iteration_bounds = array<i64: 1>, scalar_prefetch = 0 : i64, scratch_operands = 0 : i64, tpu.core_type = #tpu.core_type<tc>, window_params = [{transform_indices = @transform_0, window_bounds = array<i64: 8, 512>}, {transform_indices = @transform_1, window_bounds = array<i64: 8, 512>}]} {
    %c0 = arith.constant 0 : index
    %c0_0 = arith.constant 0 : index
    %0 = vector.load %arg1[%c0, %c0_0] : memref<8x512xf32, #tpu.memory_space<vmem>>, vector<8x512xf32>
    %1 = arith.mulf %0, %0 : vector<8x512xf32>
    %2 = tpu.iota {dimensions = array<i32: 1>} : vector<1x512xi32>
    %c1_i32 = arith.constant 1 : i32
    %3 = vector.broadcast %c1_i32 : i32 to vector<1x512xi32>
    %4 = arith.xori %2, %3 : vector<1x512xi32>
    %c1_i32_1 = arith.constant 1 : i32
    %5 = vector.broadcast %c1_i32_1 : i32 to vector<1x512xi32>
    %6 = arith.andi %2, %5 : vector<1x512xi32>
    %c0_i32 = arith.constant 0 : i32
    %7 = vector.broadcast %c0_i32 : i32 to vector<1x512xi32>
    %8 = arith.cmpi eq, %6, %7 : vector<1x512xi32>
    %c1_i32_2 = arith.constant 1 : i32
    %9 = tpu.dynamic_rotate %2 by %c1_i32_2 dim 1 : vector<1x512xi32>, i32 -> vector<1x512xi32>
    %c1_i32_3 = arith.constant 1 : i32
    %10 = tpu.dynamic_rotate %1 by %c1_i32_3 dim 1 : vector<8x512xf32>, i32 -> vector<8x512xf32>
    %c511_i32 = arith.constant 511 : i32
    %11 = tpu.dynamic_rotate %1 by %c511_i32 dim 1 : vector<8x512xf32>, i32 -> vector<8x512xf32>
    %12 = arith.cmpi eq, %9, %4 : vector<1x512xi32>
    %13 = vector.shape_cast %12 : vector<1x512xi1> to vector<1x512xi1>
    %14 = vector.broadcast %13 : vector<1x512xi1> to vector<8x512xi1>
    %15 = arith.select %14, %10, %11 : vector<8x512xi1>, vector<8x512xf32>
    %16 = arith.addf %1, %15 : vector<8x512xf32>
    %cst = arith.constant 0.000000e+00 : f32
    %17 = vector.broadcast %cst : f32 to vector<8x512xf32>
    %18 = arith.cmpf oeq, %16, %17 : vector<8x512xf32>
    %cst_4 = arith.constant 1.000000e+00 : f32
    %19 = vector.broadcast %cst_4 : f32 to vector<8x512xf32>
    %20 = arith.select %18, %19, %16 : vector<8x512xi1>, vector<8x512xf32>
    %21 = math.rsqrt %20 : vector<8x512xf32>
    %22 = arith.mulf %16, %21 : vector<8x512xf32>
    %cst_5 = arith.constant dense<0.000000e+00> : vector<8xf32>
    %23 = vector.multi_reduction <add>, %22, %cst_5 [1] : vector<8x512xf32> to vector<8xf32>
    %24 = vector.shape_cast %23 : vector<8xf32> to vector<8x1xf32>
    %cst_6 = arith.constant dense<0.000000e+00> : vector<8xf32>
    %25 = vector.multi_reduction <add>, %16, %cst_6 [1] : vector<8x512xf32> to vector<8xf32>
    %26 = vector.shape_cast %25 : vector<8xf32> to vector<8x1xf32>
    %cst_7 = arith.constant 5.000000e-01 : f32
    %27 = vector.broadcast %cst_7 : f32 to vector<8x1xf32>
    %28 = arith.mulf %27, %26 : vector<8x1xf32>
    %cst_8 = arith.constant 0.001953125 : f32
    %29 = vector.broadcast %cst_8 : f32 to vector<8x1xf32>
    %30 = arith.mulf %24, %29 : vector<8x1xf32>
    %31 = arith.mulf %30, %30 : vector<8x1xf32>
    %cst_9 = arith.constant 2.560000e+02 : f32
    %32 = vector.broadcast %cst_9 : f32 to vector<8x1xf32>
    %33 = arith.mulf %32, %31 : vector<8x1xf32>
    %34 = arith.subf %28, %33 : vector<8x1xf32>
    %cst_10 = arith.constant 0.000000e+00 : f32
    %35 = vector.broadcast %cst_10 : f32 to vector<8x1xf32>
    %36 = arith.maximumf %34, %35 : vector<8x1xf32>
    %cst_11 = arith.constant 0.00392156886 : f32
    %37 = vector.broadcast %cst_11 : f32 to vector<8x1xf32>
    %38 = arith.mulf %36, %37 : vector<8x1xf32>
    %39 = math.rsqrt %38 : vector<8x1xf32>
    %40 = arith.mulf %30, %39 : vector<8x1xf32>
    %cst_12 = arith.constant 1.000000e+00 : f32
    %41 = vector.broadcast %cst_12 : f32 to vector<8x1xf32>
    %42 = arith.subf %41, %40 : vector<8x1xf32>
    %43 = vector.broadcast %42 : vector<8x1xf32> to vector<8x512xf32>
    %44 = arith.mulf %43, %21 : vector<8x512xf32>
    %45 = vector.broadcast %39 : vector<8x1xf32> to vector<8x512xf32>
    %46 = arith.addf %45, %44 : vector<8x512xf32>
    %47 = vector.broadcast %8 : vector<1x512xi1> to vector<8x512xi1>
    %48 = arith.andi %18, %47 : vector<8x512xi1>
    %49 = arith.mulf %0, %46 : vector<8x512xf32>
    %50 = vector.shape_cast %42 : vector<8x1xf32> to vector<8x1xf32>
    %51 = vector.broadcast %50 : vector<8x1xf32> to vector<8x512xf32>
    %52 = arith.select %48, %51, %49 : vector<8x512xi1>, vector<8x512xf32>
    %c0_13 = arith.constant 0 : index
    %c0_14 = arith.constant 0 : index
    %53 = vector.load %arg2[%c0_13, %c0_14] : memref<8x512xf32, #tpu.memory_space<vmem>>, vector<8x512xf32>
    tpu.vector_store %arg2[%c0_13, %c0_14], %52 {strides = array<i32>} : memref<8x512xf32, #tpu.memory_space<vmem>>, vector<8x512xf32>,
    return
  }
  func.func @transform_0(%arg0: i32) -> (i32, i32) {
    %c0_i32 = arith.constant 0 : i32
    %c0_i32_0 = arith.constant 0 : i32
    return %arg0, %c0_i32 : i32, i32
  }
  func.func @transform_1(%arg0: i32) -> (i32, i32) {
    %c0_i32 = arith.constant 0 : i32
    %c0_i32_0 = arith.constant 0 : i32
    return %arg0, %c0_i32 : i32, i32
  }
}

</mosaic_0001>

<llo_original>
// kernel: tpu_custom_call.1
$region0: #{tpu_custom_call.1}
  #allocation0 [shape = 'u32[]', space=smem, size = 0x4, offset = 0x4, fixed_abs, tag = 'smem constant byte address 0x4 - core index']
  #allocation1 [shape = 'u32[144,128]{1,0:T(1,128)}', space=vmem, size = 0x12000, scoped, tag = 'internal scratch']
  %s0 = inlined_call_operand.hbm [shape: f32[8,512], index: 0, kind: input, shape index: {}]
  %s1 = inlined_call_operand.hbm [shape: f32[8,512], index: 1, kind: output, shape index: {}]
  %s2 = sld [smem:[#allocation0]]
  $region18: #{tpu_custom_call.1} parent=0
    _
  %s4 = ssub.s32 1, %s2
  %s5 = scalar_select 0, %s4, %s2
  $region1: #{tpu_custom_call.1} parent=0
    #allocation2 [shape = 'u8[16384]{0}', space=vmem, size = 0x4000, scoped, tag = 'input window, operand 0, single buffered']
    #allocation3 [shape = 's32[1]{0}', space=sflag, size = 0x4, scoped, tag = 'scoped memory for tpu_custom_call.1']
    #allocation4 [shape = 's32[1]{0}', space=sflag, size = 0x4, scoped, tag = 'scoped memory for tpu_custom_call.1']
    #allocation5 [shape = 'u8[16384]{0}', space=vmem, size = 0x4000, scoped, tag = 'output window, operand 0, single buffered']
    %6 = vsyncpa [#allocation3], 0
    %7 = vsyncpa [#allocation4], 0
    // Predicated region
    $region2: #{tpu_custom_call.1} parent=1 // pred_check
      _
    $region3: #{tpu_custom_call.1} parent=1 // pred_check_branch
      %9 = sbr.rel (0) target = $region5
    $region4: #{tpu_custom_call.1} parent=1 // pred_region
      %s11 = ssub.s32 512, 512
      %12 = vsyncadd [#allocation3], %s11
      %s14 = sshll.u32 [#allocation2], 4
      %s15 = int_to_ptr.vmem [resolvable:$true] %s14
      %17 = dma.hbm_to_vmem [thread:$0]  %s0, 512, %s15, [#allocation3]
    $region5: #{tpu_custom_call.1} parent=1 // pred_fallthru
      _
    // Predicated region
    $region6: #{tpu_custom_call.1} parent=1 // pred_check
      _
    $region7: #{tpu_custom_call.1} parent=1 // pred_check_branch
      %19 = sbr.rel (0) target = $region9
    $region8: #{tpu_custom_call.1} parent=1 // pred_region
      %20 = dma.done [#allocation3], 512
    $region9: #{tpu_custom_call.1} parent=1 // pred_fallthru
      _
    %v21 = vld [vmem:[#allocation2] sm:$0xff]
    %v22 = vld [vmem:[#allocation2 + $0x8] sm:$0xff]
    %v23 = vld [vmem:[#allocation2 + $0x10] sm:$0xff]
    %v24 = vld [vmem:[#allocation2 + $0x18] sm:$0xff]
    %v25 = vmul.f32 %v21, %v21
    %v26 = vmul.f32 %v22, %v22
    %v27 = vmul.f32 %v23, %v23
    %v28 = vmul.f32 %v24, %v24
    %v29 = vlaneseq
    %v30 = vand.u32 %v29, 127
    %v31 = vadd.s32 %v30, 128
    %v32 = vadd.s32 %v30, 256
    %v33 = vadd.s32 %v30, 384
    %v34 = vxor.u32 %v30, 1
    %v35 = vxor.u32 %v31, 1
    %v36 = vxor.u32 %v32, 1
    %v37 = vxor.u32 %v33, 1
    %v38 = vand.u32 %v30, 1
    %v39 = vand.u32 %v31, 1
    %v40 = vand.u32 %v32, 1
    %v41 = vand.u32 %v33, 1
    %vm42 = vcmp.eq.s32.totalorder %v38, 0
    %vm43 = vcmp.eq.s32.totalorder %v39, 0
    %vm44 = vcmp.eq.s32.totalorder %v40, 0
    %vm45 = vcmp.eq.s32.totalorder %v41, 0
    %46 = vrot.lane.b32.xlu0 %v30, 1
    %v47 = vpop.permute.xlu0 %46
    %48 = vrot.lane.b32.xlu0 %v31, 1
    %v49 = vpop.permute.xlu0 %48
    %50 = vrot.lane.b32.xlu0 %v32, 1
    %v51 = vpop.permute.xlu0 %50
    %52 = vrot.lane.b32.xlu0 %v33, 1
    %v53 = vpop.permute.xlu0 %52
    %vm54 = vcmp.lt.s32.totalorder %v30, 1
    %v55 = vsel %vm54, %v51, %v53
    %v56 = vsel %vm54, %v49, %v51
    %v57 = vsel %vm54, %v47, %v49
    %v58 = vsel %vm54, %v53, %v47
    %59 = vrot.lane.b32.xlu0 %v25, 1
    %v60 = vpop.permute.xlu0 %59
    %61 = vrot.lane.b32.xlu0 %v26, 1
    %v62 = vpop.permute.xlu0 %61
    %63 = vrot.lane.b32.xlu0 %v27, 1
    %v64 = vpop.permute.xlu0 %63
    %65 = vrot.lane.b32.xlu0 %v28, 1
    %v66 = vpop.permute.xlu0 %65
    %v67 = vsel %vm54, %v64, %v66
    %v68 = vsel %vm54, %v62, %v64
    %v69 = vsel %vm54, %v60, %v62
    %v70 = vsel %vm54, %v66, %v60
    %71 = vrot.lane.b32.xlu0 %v25, 127
    %v72 = vpop.permute.xlu0 %71
    %73 = vrot.lane.b32.xlu0 %v26, 127
    %v74 = vpop.permute.xlu0 %73
    %75 = vrot.lane.b32.xlu0 %v27, 127
    %v76 = vpop.permute.xlu0 %75
    %77 = vrot.lane.b32.xlu0 %v28, 127
    %v78 = vpop.permute.xlu0 %77
    %vm79 = vcmp.lt.s32.totalorder %v30, 127
    %v80 = vsel %vm79, %v76, %v78
    %v81 = vsel %vm79, %v74, %v76
    %v82 = vsel %vm79, %v72, %v74
    %v83 = vsel %vm79, %v78, %v72
    %vm84 = vcmp.eq.s32.totalorder %v58, %v34
    %vm85 = vcmp.eq.s32.totalorder %v57, %v35
    %vm86 = vcmp.eq.s32.totalorder %v56, %v36
    %vm87 = vcmp.eq.s32.totalorder %v55, %v37
    %v88 = vsel %vm84, 1, 0
    %v89 = vsel %vm85, 1, 0
    %v90 = vsel %vm86, 1, 0
    %v91 = vsel %vm87, 1, 0
    %v92 = vlaneseq
    %v93 = vshrl.u32 %v92, 7
    %v94 = vsub.s32 0, %v93
    %v95 = vrot.slane %v88, %v94
    %v96 = vlaneseq
    %v97 = vshrl.u32 %v96, 7
    %v98 = vsub.s32 0, %v97
    %v99 = vrot.slane %v89, %v98
    %v100 = vlaneseq
    %v101 = vshrl.u32 %v100, 7
    %v102 = vsub.s32 0, %v101
    %v103 = vrot.slane %v90, %v102
    %v104 = vlaneseq
    %v105 = vshrl.u32 %v104, 7
    %v106 = vsub.s32 0, %v105
    %v107 = vrot.slane %v91, %v106
    %vm108 = vcmp.eq.s32.totalorder %v95, 1
    %vm109 = vcmp.eq.s32.totalorder %v99, 1
    %vm110 = vcmp.eq.s32.totalorder %v103, 1
    %vm111 = vcmp.eq.s32.totalorder %v107, 1
    %v112 = vsel %vm108, %v70, %v82
    %v113 = vsel %vm109, %v69, %v81
    %v114 = vsel %vm110, %v68, %v80
    %v115 = vsel %vm111, %v67, %v83
    %v116 = vadd.f32 %v25, %v112
    %v117 = vadd.f32 %v26, %v113
    %v118 = vadd.f32 %v27, %v114
    %v119 = vadd.f32 %v28, %v115
    %vm120 = vcmp.eq.f32.partialorder %v116, 0.0
    %vm121 = vcmp.eq.f32.partialorder %v117, 0.0
    %vm122 = vcmp.eq.f32.partialorder %v118, 0.0
    %vm123 = vcmp.eq.f32.partialorder %v119, 0.0
    %v124 = vsel %vm120, 1.0, %v116
    %v125 = vsel %vm121, 1.0, %v117
    %v126 = vsel %vm122, 1.0, %v118
    %v127 = vsel %vm123, 1.0, %v119
    %v128 = vrsqrt.pop %v124
    %v129 = vrsqrt.pop %v125
    %v130 = vrsqrt.pop %v126
    %v131 = vrsqrt.pop %v127
    %v132 = vmul.f32 %v116, %v128
    %v133 = vmul.f32 %v117, %v129
    %v134 = vmul.f32 %v118, %v130
    %v135 = vmul.f32 %v119, %v131
    %v136 = vadd.f32 %v132, %v133
    %v137 = vadd.f32 %v136, %v134
    %v138 = vadd.f32 %v137, %v135
    %139 = vadd.xlane.f32.xlu0 %v138
    %v140 = vpop.xlane.xlu0 %139
    %v141 = vadd.f32 %v116, %v117
    %v142 = vadd.f32 %v141, %v118
    %v143 = vadd.f32 %v142, %v119
    %144 = vadd.xlane.f32.xlu0 %v143
    %v145 = vpop.xlane.xlu0 %144
    %v146 = vmul.f32 %v145, 0.5
    %v147 = vmul.f32 %v140, 0.001953125
    %v148 = vmul.f32 %v147, %v147
    %v149 = vmul.f32 %v148, 256.0
    %v150 = vsub.f32 %v146, %v149
    %v151 = vmax.f32 %v150, 0.0
    %v152 = vmul.f32 %v151, 0.003921569
    %v153 = vrsqrt.pop %v152
    %v154 = vmul.f32 %v147, %v153
    %v155 = vsub.f32 1.0, %v154
    %v156 = vmul.f32 %v155, %v128
    %v157 = vmul.f32 %v155, %v129
    %v158 = vmul.f32 %v155, %v130
    %v159 = vmul.f32 %v155, %v131
    %v160 = vadd.f32 %v153, %v156
    %v161 = vadd.f32 %v153, %v157
    %v162 = vadd.f32 %v153, %v158
    %v163 = vadd.f32 %v153, %v159
    %v164 = vsel %vm42, 1, 0
    %v165 = vsel %vm43, 1, 0
    %v166 = vsel %vm44, 1, 0
    %v167 = vsel %vm45, 1, 0
    %vm168 = vcmp.eq.s32.totalorder %v164, 1
    %vm169 = vcmp.eq.s32.totalorder %v165, 1
    %vm170 = vcmp.eq.s32.totalorder %v166, 1
    %vm171 = vcmp.eq.s32.totalorder %v167, 1
    %vm172 = vmand %vm120, %vm168
    %vm173 = vmand %vm121, %vm169
    %vm174 = vmand %vm122, %vm170
    %vm175 = vmand %vm123, %vm171
    %v176 = vmul.f32 %v21, %v160
    %v177 = vmul.f32 %v22, %v161
    %v178 = vmul.f32 %v23, %v162
    %v179 = vmul.f32 %v24, %v163
    %v180 = vsel %vm172, %v155, %v176
    %v181 = vsel %vm173, %v155, %v177
    %v182 = vsel %vm174, %v155, %v178
    %v183 = vsel %vm175, %v155, %v179
    %184 = vst [vmem:[#allocation5] sm:$0xff] %v180
    %185 = vst [vmem:[#allocation5 + $0x8] sm:$0xff] %v181
    %186 = vst [vmem:[#allocation5 + $0x10] sm:$0xff] %v182
    %187 = vst [vmem:[#allocation5 + $0x18] sm:$0xff] %v183
    // Predicated region
    $region10: #{tpu_custom_call.1} parent=1 // pred_check
      _
    $region11: #{tpu_custom_call.1} parent=1 // pred_check_branch
      %189 = sbr.rel (0) target = $region13
    $region12: #{tpu_custom_call.1} parent=1 // pred_region
      %s191 = ssub.s32 512, 512
      %192 = vsyncadd [#allocation4], %s191
      %s194 = sshll.u32 [#allocation5], 4
      %s195 = int_to_ptr.vmem [resolvable:$true] %s194
      %197 = dma.vmem_to_hbm [thread:$0]  %s195, 512, %s1, [#allocation4]
    $region13: #{tpu_custom_call.1} parent=1 // pred_fallthru
      _
    // Predicated region
    $region14: #{tpu_custom_call.1} parent=1 // pred_check
      _
    $region15: #{tpu_custom_call.1} parent=1 // pred_check_branch
      %199 = sbr.rel (0) target = $region17
    $region16: #{tpu_custom_call.1} parent=1 // pred_region
      %200 = dma.done [#allocation4], 512
    $region17: #{tpu_custom_call.1} parent=1 // pred_fallthru
      _
    %201 = vsyncpa [#allocation3], 1
    %202 = vsyncpa [#allocation4], 1

</llo_original>
